<compile_context>
chip_gen: v7x
topology: tpu7x:2x2x1
jax: 0.10.0
libtpu: 0.0.40
codegen_flags: <defaults>
</compile_context>

<pallas_src>
import functools

import jax
import jax.numpy as jnp
from jax.experimental import pallas as pl
from jax.experimental.pallas import tpu as pltpu


def _round_up(x, m):
    return ((x + m - 1) // m) * m


def _spiralconv_kernel(spirals_ref, w_ref, b_ref, out_ref, *, num_pts):
    # spirals_ref : (tm, K)    K = spiral_size * feats
    # w_ref       : (K, Np)    resident across the M grid (constant index_map)
    # b_ref       : (1, Np)    resident across the M grid
    # out_ref     : (tm, Np)
    tm = out_ref.shape[0]

    # MXU matmul with f32 accumulation, fused bias add.
    y = jnp.dot(spirals_ref[...], w_ref[...],
                preferred_element_type=jnp.float32) + b_ref[...]

    # ELU (alpha = 1.0): y if y > 0 else exp(y) - 1.  Clamp exp's argument so
    # the EUP path never sees large positives (its result is discarded there).
    y = jnp.where(y > 0, y, jnp.exp(jnp.minimum(y, 0.0)) - 1.0)

    # zero_padding: zero the last point (row index num_pts - 1) of each batch.
    # Mask built on a (tm, 1) column using the GLOBAL row index, broadcast by
    # the select -> Np x fewer integer-modulo ops on the VPU.
    row = (jax.lax.broadcasted_iota(jnp.int32, (tm, 1), 0)
           + pl.program_id(0) * tm)
    keep = (row % num_pts) != (num_pts - 1)
    out_ref[...] = jnp.where(keep, y, 0.0).astype(out_ref.dtype)


def _choose_tm(M, K, Np, budget_bytes=24 * 1024 * 1024):
    """Largest M tile (multiple of 8) whose double-buffered input/output
    blocks plus the resident weight+bias fit comfortably under the scoped
    VMEM budget of every TPU generation (v7x: 32 MiB scoped / 64 MiB phys).
    Weight/bias are conservatively counted twice."""
    weight_bytes = 2 * (K * Np + Np) * 4
    tm = 8
    for cand in (2048, 1024, 512, 256, 128, 64, 32, 16, 8):
        if 2 * cand * (K + Np) * 4 + weight_bytes <= budget_bytes:
            tm = cand
            break
    return min(tm, _round_up(M, 8))


def spiral_conv_forward(x, spiral_adj, weight_t, bias):
    """SpiralConv forward.

    x          : (bsize, num_pts, feats) float32
    spiral_adj : (bsize, num_pts, spiral_size) int32 indices into num_pts axis
    weight_t   : (spiral_size*feats, out_c) float32 (PyTorch weight, transposed)
    bias       : (out_c,) float32
    returns    : (bsize, num_pts, out_c) float32
    """
    bsize, num_pts, feats = x.shape
    _, _, spiral_size = spiral_adj.shape
    out_c = weight_t.shape[1]

    # --- glue: per-batch gather of spiral neighborhoods (plain JAX) ---
    idx = spiral_adj.reshape(bsize, num_pts * spiral_size)
    gathered = jnp.take_along_axis(x, idx[:, :, None], axis=1)
    spirals = gathered.reshape(bsize * num_pts, spiral_size * feats)

    M, K = spirals.shape

    # Lane-dense output: pad N up to a multiple of 128 so stores are unmasked
    # full-width vst and the MXU produces full result columns; slice after.
    Np = _round_up(out_c, 128)
    w_pad = jnp.pad(weight_t.astype(jnp.float32), ((0, 0), (0, Np - out_c)))
    b_pad = jnp.pad(bias.astype(jnp.float32).reshape(1, out_c),
                    ((0, 0), (0, Np - out_c)))

    # Tile over M; pad M to a multiple of the tile (padded rows are zeros,
    # compute harmlessly, and are sliced off below).
    tm = _choose_tm(M, K, Np)
    Mp = _round_up(M, tm)
    if Mp != M:
        spirals = jnp.pad(spirals, ((0, Mp - M), (0, 0)))

    # TODO(synk): optionally cast spirals/w_pad to bfloat16 for the MXU (keep
    # f32 accumulation) once model tolerance allows.

    kernel = functools.partial(_spiralconv_kernel, num_pts=num_pts)

    out = pl.pallas_call(
        kernel,
        out_shape=jax.ShapeDtypeStruct((Mp, Np), jnp.float32),
        grid=(Mp // tm,),
        in_specs=[
            pl.BlockSpec((tm, K), lambda i: (i, 0)),
            pl.BlockSpec((K, Np), lambda i: (0, 0)),   # weight stays resident
            pl.BlockSpec((1, Np), lambda i: (0, 0)),   # bias stays resident
        ],
        out_specs=pl.BlockSpec((tm, Np), lambda i: (i, 0)),
        compiler_params=pltpu.CompilerParams(
            dimension_semantics=("parallel",),   # independent rows -> megacore
            vmem_limit_bytes=32 * 1024 * 1024,
        ),
    )(spirals, w_pad, b_pad)

    return out[:M, :out_c].reshape(bsize, num_pts, out_c)


def _reference_forward(x, spiral_adj, weight_t, bias):
    """Pure-JAX reference matching the PyTorch module semantics."""
    bsize, num_pts, feats = x.shape
    _, _, spiral_size = spiral_adj.shape
    out_c = weight_t.shape[1]
    idx = spiral_adj.reshape(bsize, num_pts * spiral_size)
    gathered = jnp.take_along_axis(x, idx[:, :, None], axis=1)
    spirals = gathered.reshape(bsize * num_pts, spiral_size * feats)
    y = spirals @ weight_t + bias
    y = jnp.where(y > 0, y, jnp.exp(y) - 1.0)  # ELU, alpha=1
    y = y.reshape(bsize, num_pts, out_c)
    pad = jnp.ones((1, num_pts, 1), jnp.float32).at[0, -1, 0].set(0.0)
    return y * pad


if __name__ == "__main__":
    # Small shapes consistent with the module's forward.
    bsize, num_pts, feats = 2, 16, 4      # in_c = 4
    spiral_size = 8
    out_c = 32

    key = jax.random.PRNGKey(0)
    kx, kadj, kw, kb = jax.random.split(key, 4)

    x = jax.random.normal(kx, (bsize, num_pts, feats), dtype=jnp.float32)
    spiral_adj = jax.random.randint(
        kadj, (bsize, num_pts, spiral_size), 0, num_pts, dtype=jnp.int32)

    # Deterministic nn.Linear(in_c*spiral_size, out_c) parameters.
    in_features = feats * spiral_size
    bound = 1.0 / (in_features ** 0.5)
    weight_t = jax.random.uniform(
        kw, (in_features, out_c), minval=-bound, maxval=bound,
        dtype=jnp.float32)
    bias = jax.random.uniform(
        kb, (out_c,), minval=-bound, maxval=bound, dtype=jnp.float32)

    out = spiral_conv_forward(x, spiral_adj, weight_t, bias)
    out = jax.block_until_ready(out)

    ref = _reference_forward(x, spiral_adj, weight_t, bias)
    assert out.shape == (bsize, num_pts, out_c)
    assert jnp.allclose(out, ref, atol=1e-5, rtol=1e-5), "mismatch vs reference"
    # Last point of every batch must be zeroed.
    assert jnp.all(out[:, -1, :] == 0.0)

    print("KERNEL_OK")
</pallas_src>

<mosaic_0001>
module attributes {stable_mosaic.version = 11 : i64} {
  func.func @_spiralconv_kernel(%arg0: i32, %arg1: memref<32x32xf32, #tpu.memory_space<vmem>>, %arg2: memref<32x128xf32, #tpu.memory_space<vmem>>, %arg3: memref<1x128xf32, #tpu.memory_space<vmem>>, %arg4: memref<32x128xf32, #tpu.memory_space<vmem>>) attributes {dimension_semantics = [#tpu.dimension_semantics<parallel>], iteration_bounds = array<i64: 1>, scalar_prefetch = 0 : i64, scratch_operands = 0 : i64, tpu.core_type = #tpu.core_type<tc>, window_params = [{transform_indices = @transform_0, window_bounds = array<i64: 32, 32>}, {pipeline_mode = #tpu.pipeline_mode<synchronous>, transform_indices = @transform_1, window_bounds = array<i64: 32, 128>}, {pipeline_mode = #tpu.pipeline_mode<synchronous>, transform_indices = @transform_2, window_bounds = array<i64: 1, 128>}, {transform_indices = @transform_3, window_bounds = array<i64: 32, 128>}]} {
    %c0 = arith.constant 0 : index
    %c0_0 = arith.constant 0 : index
    %0 = vector.load %arg1[%c0, %c0_0] : memref<32x32xf32, #tpu.memory_space<vmem>>, vector<32x32xf32>
    %c0_1 = arith.constant 0 : index
    %c0_2 = arith.constant 0 : index
    %1 = vector.load %arg2[%c0_1, %c0_2] : memref<32x128xf32, #tpu.memory_space<vmem>>, vector<32x128xf32>
    %cst = arith.constant dense<0.000000e+00> : vector<32x128xf32>
    %2 = tpu.matmul %0, %1, %cst {dimension_numbers = #tpu.dot_dimension_numbers<[1], [0], [0], [1], [0, 0, 1, 1], [], []>} : vector<32x32xf32>, vector<32x128xf32>, vector<32x128xf32> -> vector<32x128xf32>
    %c0_3 = arith.constant 0 : index
    %c0_4 = arith.constant 0 : index
    %3 = vector.load %arg3[%c0_3, %c0_4] : memref<1x128xf32, #tpu.memory_space<vmem>>, vector<1x128xf32>
    %4 = vector.broadcast %3 : vector<1x128xf32> to vector<32x128xf32>
    %5 = arith.addf %2, %4 : vector<32x128xf32>
    %cst_5 = arith.constant 0.000000e+00 : f32
    %6 = vector.broadcast %cst_5 : f32 to vector<32x128xf32>
    %7 = arith.cmpf ogt, %5, %6 : vector<32x128xf32>
    %cst_6 = arith.constant 0.000000e+00 : f32
    %8 = vector.broadcast %cst_6 : f32 to vector<32x128xf32>
    %9 = arith.minimumf %5, %8 : vector<32x128xf32>
    %10 = math.exp %9 : vector<32x128xf32>
    %cst_7 = arith.constant 1.000000e+00 : f32
    %11 = vector.broadcast %cst_7 : f32 to vector<32x128xf32>
    %12 = arith.subf %10, %11 : vector<32x128xf32>
    %13 = arith.select %7, %5, %12 : vector<32x128xi1>, vector<32x128xf32>
    %14 = tpu.iota {dimensions = array<i32: 0>} : vector<32x1xi32>
    %c32_i32 = arith.constant 32 : i32
    %15 = arith.muli %arg0, %c32_i32 : i32
    %16 = vector.broadcast %15 : i32 to vector<32x1xi32>
    %17 = arith.addi %14, %16 : vector<32x1xi32>
    %c16_i32 = arith.constant 16 : i32
    %c0_i32 = arith.constant 0 : i32
    %18 = arith.cmpi eq, %c16_i32, %c0_i32 : i32
    %c1_i32 = arith.constant 1 : i32
    %19 = arith.select %18, %c1_i32, %c16_i32 : i32
    %20 = vector.broadcast %19 : i32 to vector<32x1xi32>
    %21 = arith.remsi %17, %20 : vector<32x1xi32>
    %c0_i32_8 = arith.constant 0 : i32
    %22 = vector.broadcast %c0_i32_8 : i32 to vector<32x1xi32>
    %23 = arith.cmpi ne, %21, %22 : vector<32x1xi32>
    %c0_i32_9 = arith.constant 0 : i32
    %24 = vector.broadcast %c0_i32_9 : i32 to vector<32x1xi32>
    %25 = arith.cmpi slt, %21, %24 : vector<32x1xi32>
    %c0_i32_10 = arith.constant 0 : i32
    %26 = arith.cmpi slt, %19, %c0_i32_10 : i32
    %27 = vector.broadcast %26 : i1 to vector<32x1xi1>
    %28 = vector.broadcast %27 : vector<32x1xi1> to vector<32x1xi1>
    %29 = arith.xori %25, %28 : vector<32x1xi1>
    %30 = arith.andi %29, %23 : vector<32x1xi1>
    %31 = vector.broadcast %19 : i32 to vector<32x1xi32>
    %32 = arith.addi %21, %31 : vector<32x1xi32>
    %33 = arith.select %30, %32, %21 : vector<32x1xi1>, vector<32x1xi32>
    %c15_i32 = arith.constant 15 : i32
    %34 = vector.broadcast %c15_i32 : i32 to vector<32x1xi32>
    %35 = arith.cmpi ne, %33, %34 : vector<32x1xi32>
    %cst_11 = arith.constant 0.000000e+00 : f32
    %36 = vector.shape_cast %35 : vector<32x1xi1> to vector<32x1xi1>
    %37 = vector.broadcast %36 : vector<32x1xi1> to vector<32x128xi1>
    %38 = vector.broadcast %cst_11 : f32 to vector<32x128xf32>
    %39 = arith.select %37, %13, %38 : vector<32x128xi1>, vector<32x128xf32>
    %c0_12 = arith.constant 0 : index
    %c0_13 = arith.constant 0 : index
    %40 = vector.load %arg4[%c0_12, %c0_13] : memref<32x128xf32, #tpu.memory_space<vmem>>, vector<32x128xf32>
    tpu.vector_store %arg4[%c0_12, %c0_13], %39 {strides = array<i32>} : memref<32x128xf32, #tpu.memory_space<vmem>>, vector<32x128xf32>,
    return
  }
  func.func @transform_0(%arg0: i32) -> (i32, i32) {
    %c0_i32 = arith.constant 0 : i32
    %c0_i32_0 = arith.constant 0 : i32
    return %arg0, %c0_i32 : i32, i32
  }
  func.func @transform_1(%arg0: i32) -> (i32, i32) {
    %c0_i32 = arith.constant 0 : i32
    %c0_i32_0 = arith.constant 0 : i32
    %c0_i32_1 = arith.constant 0 : i32
    return %c0_i32, %c0_i32_0 : i32, i32
  }
  func.func @transform_2(%arg0: i32) -> (i32, i32) {
    %c0_i32 = arith.constant 0 : i32
    %c0_i32_0 = arith.constant 0 : i32
    %c0_i32_1 = arith.constant 0 : i32
    return %c0_i32, %c0_i32_0 : i32, i32
  }
  func.func @transform_3(%arg0: i32) -> (i32, i32) {
    %c0_i32 = arith.constant 0 : i32
    %c0_i32_0 = arith.constant 0 : i32
    return %arg0, %c0_i32 : i32, i32
  }
}

</mosaic_0001>

<llo_original>
// kernel: tpu_custom_call.1
$region0: #{tpu_custom_call.1}
  #allocation0 [shape = 'u32[]', space=smem, size = 0x4, offset = 0x4, fixed_abs, tag = 'smem constant byte address 0x4 - core index']
  #allocation1 [shape = 'u32[144,128]{1,0:T(1,128)}', space=vmem, size = 0x12000, scoped, tag = 'internal scratch']
  %s0 = inlined_call_operand.hbm [shape: f32[32,32], index: 0, kind: input, shape index: {}]
  %s1 = inlined_call_operand.hbm [shape: f32[32,128], index: 1, kind: input, shape index: {}]
  %s2 = inlined_call_operand.vmem [shape: f32[1,128], index: 2, kind: input, shape index: {}]
  %s3 = inlined_call_operand.hbm [shape: f32[32,128], index: 3, kind: output, shape index: {}]
  %s4 = sld [smem:[#allocation0]]
  $region30: #{tpu_custom_call.1} parent=0
    _
  %s6 = ssub.s32 1, %s4
  %s7 = scalar_select 0, %s6, %s4
  $region1: #{tpu_custom_call.1} parent=0
    #allocation2 [shape = 'u8[16384]{0}', space=vmem, size = 0x4000, scoped, tag = 'input window, operand 0, single buffered']
    #allocation3 [shape = 's32[1]{0}', space=sflag, size = 0x4, scoped, tag = 'scoped memory for tpu_custom_call.1']
    #allocation4 [shape = 's32[1]{0}', space=sflag, size = 0x4, scoped, tag = 'scoped memory for tpu_custom_call.1']
    #allocation5 [shape = 'u8[16384]{0}', space=vmem, size = 0x4000, scoped, tag = 'input window, operand 1, single buffered']
    #allocation6 [shape = 's32[1]{0}', space=sflag, size = 0x4, scoped, tag = 'scoped memory for tpu_custom_call.1']
    #allocation7 [shape = 'u8[16384]{0}', space=vmem, size = 0x4000, scoped, tag = 'output window, operand 0, single buffered']
    %8 = vsyncpa [#allocation3], 0
    %9 = vsyncpa [#allocation6], 0
    %10 = vsyncpa [#allocation4], 0
    // Predicated region
    $region2: #{tpu_custom_call.1} parent=1 // pred_check
      _
    $region3: #{tpu_custom_call.1} parent=1 // pred_check_branch
      %12 = sbr.rel (0) target = $region5
    $region4: #{tpu_custom_call.1} parent=1 // pred_region
      %s14 = ssub.s32 512, 512
      %15 = vsyncadd [#allocation3], %s14
      %s16 = sshll.u32 [#allocation2], 4
      %s17 = int_to_ptr.vmem [resolvable:$true] %s16
      %22 = dma.hbm_to_vmem [thread:$0]  %s0, 512, %s17, [#allocation3], 128, 128, 8
    $region5: #{tpu_custom_call.1} parent=1 // pred_fallthru
      _
    // Predicated region
    $region6: #{tpu_custom_call.1} parent=1 // pred_check
      _
    $region7: #{tpu_custom_call.1} parent=1 // pred_check_branch
      %24 = sbr.rel (0) target = $region9
    $region8: #{tpu_custom_call.1} parent=1 // pred_region
      %s26 = ssub.s32 512, 512
      %27 = vsyncadd [#allocation6], %s26
      %s28 = sshll.u32 [#allocation5], 4
      %s29 = int_to_ptr.vmem [resolvable:$true] %s28
      %34 = dma.hbm_to_vmem [thread:$0]  %s1, 512, %s29, [#allocation6], 128, 128, 8
    $region9: #{tpu_custom_call.1} parent=1 // pred_fallthru
      _
    // Predicated region
    $region10: #{tpu_custom_call.1} parent=1 // pred_check
      _
    $region11: #{tpu_custom_call.1} parent=1 // pred_check_branch
      %36 = sbr.rel (0) target = $region13
    $region12: #{tpu_custom_call.1} parent=1 // pred_region
      _
    $region13: #{tpu_custom_call.1} parent=1 // pred_fallthru
      _
    // Predicated region
    $region14: #{tpu_custom_call.1} parent=1 // pred_check
      _
    $region15: #{tpu_custom_call.1} parent=1 // pred_check_branch
      %38 = sbr.rel (0) target = $region17
    $region16: #{tpu_custom_call.1} parent=1 // pred_region
      %39 = dma.done [#allocation3], 512
    $region17: #{tpu_custom_call.1} parent=1 // pred_fallthru
      _
    // Predicated region
    $region18: #{tpu_custom_call.1} parent=1 // pred_check
      _
    $region19: #{tpu_custom_call.1} parent=1 // pred_check_branch
      %41 = sbr.rel (0) target = $region21
    $region20: #{tpu_custom_call.1} parent=1 // pred_region
      %42 = dma.done [#allocation6], 512
    $region21: #{tpu_custom_call.1} parent=1 // pred_fallthru
      _
    %v43 = vld [vmem:[#allocation2] sm:$0xff]
    %v44 = vld [vmem:[#allocation2 + $0x8] sm:$0xff]
    %v45 = vld [vmem:[#allocation2 + $0x10] sm:$0xff]
    %v46 = vld [vmem:[#allocation2 + $0x18] sm:$0xff]
    %v47 = vld [vmem:[#allocation5] sm:$0xff]
    %v48 = vld [vmem:[#allocation5 + $0x8] sm:$0xff]
    %v49 = vld [vmem:[#allocation5 + $0x10] sm:$0xff]
    %v50 = vld [vmem:[#allocation5 + $0x18] sm:$0xff]
    %v51 = vld [vmem:[%s2] sm:$0x1]
    %v53 = vlaneseq
    %v54 = vshrl.u32 %v53, 7
    %v55 = vsub.s32 0, %v54
    %v56 = vrot.slane %v51, %v55
    %vm58 = vcmask 261120
    %v60 = vsel %vm58, %v43, 0
    %v63 = vsel %vm58, %v44, 0
    %v66 = vsel %vm58, %v45, 0
    %v69 = vsel %vm58, %v46, 0
    %71 = vmatprep.subr.mxu0 0.0
    %72 = vmatpush1.msra.mxu0 %v47
    %73 = vmatprep.subr.mxu0 0.0
    %74 = vmatpush1.msra.mxu0 %v48
    %75 = vmatprep.subr.mxu0 0.0
    %76 = vmatpush1.msra.mxu0 %v49
    %77 = vmatprep.subr.mxu0 0.0
    %78 = vmatpush1.msra.mxu0 %v50
    %79 = vmatprep.subr.mxu0 0.0
    %80 = vmatpush1.msra.mxu0 0.0
    %81 = vmatprep.subr.mxu0 0.0
    %82 = vmatpush1.msra.mxu0 0.0
    %83 = vmatprep.subr.mxu0 0.0
    %84 = vmatpush1.msra.mxu0 0.0
    %85 = vmatprep.subr.mxu0 0.0
    %86 = vmatpush1.msra.mxu0 0.0
    %87 = vmatprep.subr.mxu0 0.0
    %88 = vmatpush1.msra.mxu0 0.0
    %89 = vmatprep.subr.mxu0 0.0
    %90 = vmatpush1.msra.mxu0 0.0
    %91 = vmatprep.subr.mxu0 0.0
    %92 = vmatpush1.msra.mxu0 0.0
    %93 = vmatprep.subr.mxu0 0.0
    %94 = vmatpush1.msra.mxu0 0.0
    %95 = vmatprep.subr.mxu0 0.0
    %96 = vmatpush1.msra.mxu0 0.0
    %97 = vmatprep.subr.mxu0 0.0
    %98 = vmatpush1.msra.mxu0 0.0
    %99 = vmatprep.subr.mxu0 0.0
    %100 = vmatpush1.msra.mxu0 0.0
    %101 = vmatprep.subr.mxu0 0.0
    %102 = vmatpush1.msra.mxu0 0.0
    %103 = vmatprep.subr.mxu0 0.0
    %104 = vmatpush1.msra.mxu0 0.0
    %105 = vmatprep.subr.mxu0 0.0
    %106 = vmatpush1.msra.mxu0 0.0
    %107 = vmatprep.subr.mxu0 0.0
    %108 = vmatpush1.msra.mxu0 0.0
    %109 = vmatprep.subr.mxu0 0.0
    %110 = vmatpush1.msra.mxu0 0.0
    %111 = vmatprep.subr.mxu0 0.0
    %112 = vmatpush1.msra.mxu0 0.0
    %113 = vmatprep.subr.mxu0 0.0
    %114 = vmatpush1.msra.mxu0 0.0
    %115 = vmatprep.subr.mxu0 0.0
    %116 = vmatpush1.msra.mxu0 0.0
    %117 = vmatprep.subr.mxu0 0.0
    %118 = vmatpush1.msra.mxu0 0.0
    %119 = vmatprep.subr.mxu0 0.0
    %120 = vmatpush1.msra.mxu0 0.0
    %121 = vmatprep.subr.mxu0 0.0
    %122 = vmatpush1.msra.mxu0 0.0
    %123 = vmatprep.subr.mxu0 0.0
    %124 = vmatpush1.msra.mxu0 0.0
    %125 = vmatprep.subr.mxu0 0.0
    %126 = vmatpush1.msra.mxu0 0.0
    %127 = vmatprep.subr.mxu0 0.0
    %128 = vmatpush1.msra.mxu0 0.0
    %129 = vmatprep.subr.mxu0 0.0
    %130 = vmatpush1.msra.mxu0 0.0
    %131 = vmatprep.subr.mxu0 0.0
    %132 = vmatpush1.msra.mxu0 0.0
    %133 = vmatprep.subr.mxu0 0.0
    %134 = vmatpush1.msra.mxu0 0.0
    %135 = vmatprep.mubr.f32.mxu0 0.0
    %136 = vmatmul.mubr.f32.gmra.mrb[0].mxu0 %v60
    %v137 = vpop.f32.mrb[0].mxu0
    %v138 = vadd.f32 %v56, %v137
    %v139 = vpop.f32.mrb[0].mxu0
    %140 = vmatprep.mubr.f32.mxu0 0.0
    %141 = vmatmul.mubr.f32.gmra.mrb[0].mxu0 %v63
    %v142 = vpop.f32.mrb[0].mxu0
    %v143 = vadd.f32 %v56, %v142
    %v144 = vpop.f32.mrb[0].mxu0
    %145 = vmatprep.mubr.f32.mxu0 0.0
    %146 = vmatmul.mubr.f32.gmra.mrb[0].mxu0 %v66
    %v147 = vpop.f32.mrb[0].mxu0
    %v148 = vadd.f32 %v56, %v147
    %v149 = vpop.f32.mrb[0].mxu0
    %150 = vmatprep.mubr.f32.mxu0 0.0
    %151 = vmatmul.mubr.f32.gmra.mrb[0].mxu0 %v69
    %v152 = vpop.f32.mrb[0].mxu0
    %v153 = vadd.f32 %v56, %v152
    %v154 = vpop.f32.mrb[0].mxu0
    %155 = vdwg.mxu0
    %vm156 = vcmp.gt.f32.partialorder %v138, 0.0
    %vm157 = vcmp.gt.f32.partialorder %v143, 0.0
    %vm158 = vcmp.gt.f32.partialorder %v148, 0.0
    %vm159 = vcmp.gt.f32.partialorder %v153, 0.0
    %v160 = vmin.f32 %v138, 0.0
    %v161 = vmin.f32 %v143, 0.0
    %v162 = vmin.f32 %v148, 0.0
    %v163 = vmin.f32 %v153, 0.0
    %v164 = vmul.f32 %v160, 1.442695
    %v165 = vpow.pop %v164
    %v166 = vmul.f32 %v161, 1.442695
    %v167 = vpow.pop %v166
    %v168 = vmul.f32 %v162, 1.442695
    %v169 = vpow.pop %v168
    %v170 = vmul.f32 %v163, 1.442695
    %v171 = vpow.pop %v170
    %v172 = vsub.f32 %v165, 1.0
    %v173 = vsub.f32 %v167, 1.0
    %v174 = vsub.f32 %v169, 1.0
    %v175 = vsub.f32 %v171, 1.0
    %v176 = vsel %vm156, %v138, %v172
    %v177 = vsel %vm157, %v143, %v173
    %v178 = vsel %vm158, %v148, %v174
    %v179 = vsel %vm159, %v153, %v175
    %v180 = vlaneseq
    %v181 = vshrl.u32 %v180, 7
    %v182 = vadd.s32 %v181, 8
    %v183 = vadd.s32 %v181, 16
    %v184 = vadd.s32 %v181, 24
    %s185 = smul.u32 0, 32
    %v186 = vstv %s185
    %v187 = vadd.s32 %v181, %v186
    %v188 = vadd.s32 %v182, %v186
    %v189 = vadd.s32 %v183, %v186
    %v190 = vadd.s32 %v184, %v186
    %vm191 = vcmp.lt.s32.totalorder %v187, 0
    %v192 = vsub.s32 0, %v187
    %v193 = vsel %vm191, %v192, %v187
    %v194 = vshrl.u32 %v193, 4
    %v195 = vand.u32 %v193, 15
    %v196 = vsub.s32 0, %v195
    %v197 = vsel %vm191, %v196, %v195
    %vm198 = vcmp.lt.s32.totalorder %v188, 0
    %v199 = vsub.s32 0, %v188
    %v200 = vsel %vm198, %v199, %v188
    %v201 = vshrl.u32 %v200, 4
    %v202 = vand.u32 %v200, 15
    %v203 = vsub.s32 0, %v202
    %v204 = vsel %vm198, %v203, %v202
    %vm205 = vcmp.lt.s32.totalorder %v189, 0
    %v206 = vsub.s32 0, %v189
    %v207 = vsel %vm205, %v206, %v189
    %v208 = vshrl.u32 %v207, 4
    %v209 = vand.u32 %v207, 15
    %v210 = vsub.s32 0, %v209
    %v211 = vsel %vm205, %v210, %v209
    %vm212 = vcmp.lt.s32.totalorder %v190, 0
    %v213 = vsub.s32 0, %v190
    %v214 = vsel %vm212, %v213, %v190
    %v215 = vshrl.u32 %v214, 4
    %v216 = vand.u32 %v214, 15
    %v217 = vsub.s32 0, %v216
    %v218 = vsel %vm212, %v217, %v216
    %vm219 = vcmp.ne.s32.totalorder %v197, 0
    %vm220 = vcmp.ne.s32.totalorder %v204, 0
    %vm221 = vcmp.ne.s32.totalorder %v211, 0
    %vm222 = vcmp.ne.s32.totalorder %v218, 0
    %vm223 = vcmp.lt.s32.totalorder %v197, 0
    %vm224 = vcmp.lt.s32.totalorder %v204, 0
    %vm225 = vcmp.lt.s32.totalorder %v211, 0
    %vm226 = vcmp.lt.s32.totalorder %v218, 0
    %vm227 = vmand %vm223, %vm219
    %vm228 = vmand %vm224, %vm220
    %vm229 = vmand %vm225, %vm221
    %vm230 = vmand %vm226, %vm222
    %v231 = vadd.s32 %v197, 16
    %v232 = vadd.s32 %v204, 16
    %v233 = vadd.s32 %v211, 16
    %v234 = vadd.s32 %v218, 16
    %v235 = vsel %vm227, %v231, %v197
    %v236 = vsel %vm228, %v232, %v204
    %v237 = vsel %vm229, %v233, %v211
    %v238 = vsel %vm230, %v234, %v218
    %vm239 = vcmp.ne.s32.totalorder %v235, 15
    %vm240 = vcmp.ne.s32.totalorder %v236, 15
    %vm241 = vcmp.ne.s32.totalorder %v237, 15
    %vm242 = vcmp.ne.s32.totalorder %v238, 15
    %v243 = vsel %vm239, 1, 0
    %v244 = vsel %vm240, 1, 0
    %v245 = vsel %vm241, 1, 0
    %v246 = vsel %vm242, 1, 0
    %vm247 = vcmp.eq.s32.totalorder %v243, 1
    %vm248 = vcmp.eq.s32.totalorder %v244, 1
    %vm249 = vcmp.eq.s32.totalorder %v245, 1
    %vm250 = vcmp.eq.s32.totalorder %v246, 1
    %v251 = vsel %vm247, %v176, 0.0
    %v252 = vsel %vm248, %v177, 0.0
    %v253 = vsel %vm249, %v178, 0.0
    %v254 = vsel %vm250, %v179, 0.0
    %255 = vst [vmem:[#allocation7] sm:$0xff] %v251
    %256 = vst [vmem:[#allocation7 + $0x8] sm:$0xff] %v252
    %257 = vst [vmem:[#allocation7 + $0x10] sm:$0xff] %v253
    %258 = vst [vmem:[#allocation7 + $0x18] sm:$0xff] %v254
    // Predicated region
    $region22: #{tpu_custom_call.1} parent=1 // pred_check
      _
    $region23: #{tpu_custom_call.1} parent=1 // pred_check_branch
      %260 = sbr.rel (0) target = $region25
    $region24: #{tpu_custom_call.1} parent=1 // pred_region
      %s262 = ssub.s32 512, 512
      %263 = vsyncadd [#allocation4], %s262
      %s264 = sshll.u32 [#allocation7], 4
      %s265 = int_to_ptr.vmem [resolvable:$true] %s264
      %270 = dma.vmem_to_hbm [thread:$0]  %s265, 512, %s3, [#allocation4], 128, 128, 8
    $region25: #{tpu_custom_call.1} parent=1 // pred_fallthru
      _
    // Predicated region
    $region26: #{tpu_custom_call.1} parent=1 // pred_check
      _
    $region27: #{tpu_custom_call.1} parent=1 // pred_check_branch
      %272 = sbr.rel (0) target = $region29
    $region28: #{tpu_custom_call.1} parent=1 // pred_region
      %273 = dma.done [#allocation4], 512
    $region29: #{tpu_custom_call.1} parent=1 // pred_fallthru
      _
    %274 = vsyncpa [#allocation3], 1
    %275 = vsyncpa [#allocation6], 1
    %276 = vsyncpa [#allocation4], 1

</llo_original>
